<compile_context>
chip_gen: v5e
topology: v5e:2x2
jax: 0.10.0
libtpu: 0.0.40
codegen_flags: <defaults>
</compile_context>

<pallas_src>
import jax
import jax.numpy as jnp
from jax.experimental import pallas as pl
from jax.experimental.pallas import tpu as pltpu

# ---- small, TPU-friendly synthetic config -------------------------------
FRAME = 128              # DFT size == frame length == hop
NFRAMES = 8              # frames per timbre
T = FRAME * NFRAMES      # audio length per timbre
NFREQ = FRAME            # full DFT (lane-dense)
HIDDEN = 128             # encoder/decoder hidden width
LATENT = 64              # logical latent width
LATENT_PAD = 128         # lane-padded latent width (pad is exactly zero)


# ---------------------------- Pallas kernel ------------------------------
def vae_interp_kernel(r_ref, t1_ref, t2_ref, w0_ref, wmid_ref, wvoc_ref,
                      b_ref, out_ref):
    r = r_ref[pl.program_id(0)]                       # per-instance scalar (SMEM)

    # ---- framing stack (in-kernel, 8-row aligned vreg copies) ------------
    frames = jnp.concatenate([t1_ref[...], t2_ref[...]], axis=0)   # (16, 128)

    # ---- fused [windowed DFT -> encoder layer 1] --------------------------
    # W0 = [(win*C)@We1 | (-win*S)@We1]  ->  h = relu(frames @ W0 + [be1|be1])
    h_wide = jnp.dot(frames.astype(jnp.bfloat16), w0_ref[...],
                     preferred_element_type=jnp.float32)           # (16, 256)
    h_wide = jnp.maximum(h_wide + b_ref[0:1, :], 0.0)
    # sublane stack: rows = [h1_re; h2_re; h1_im; h2_im]
    h = jnp.concatenate([h_wide[:, :HIDDEN], h_wide[:, HIDDEN:]],
                        axis=0)                                    # (32, 128)

    # ---- encoder layer 2 (all four spectra in one pass) -------------------
    lat = jnp.dot(h.astype(jnp.bfloat16), wmid_ref[0],
                  preferred_element_type=jnp.float32)
    lat = lat + b_ref[1:2, :LATENT_PAD]                            # (32, 128)

    # ---- latent interpolation: e2 + r * (e1 - e2) --------------------------
    e1r = lat[0 * NFRAMES:1 * NFRAMES]
    e2r = lat[1 * NFRAMES:2 * NFRAMES]
    e1i = lat[2 * NFRAMES:3 * NFRAMES]
    e2i = lat[3 * NFRAMES:4 * NFRAMES]
    er = e2r + r * (e1r - e2r)
    ei = e2i + r * (e1i - e2i)
    emb = jnp.concatenate([er, ei], axis=0)                        # (16, 128)

    # ---- decoder layer 1 (real + imag in one pass) -------------------------
    hd = jnp.dot(emb.astype(jnp.bfloat16), wmid_ref[1],
                 preferred_element_type=jnp.float32)
    hd = jnp.maximum(hd + b_ref[2:3, :HIDDEN], 0.0)                # (16, 128)

    # ---- fused [decoder layer 2 -> inverse DFT] (hop == FRAME) -------------
    # out = [hd_re | hd_im] @ [Wd2@iC ; -Wd2@iS] + bd2@(iC - iS)
    spec_cat = jnp.concatenate([hd[:NFRAMES], hd[NFRAMES:]],
                               axis=-1)                            # (8, 256)
    out_ref[...] = (jnp.dot(spec_cat.astype(jnp.bfloat16), wvoc_ref[...],
                            preferred_element_type=jnp.float32)
                    + b_ref[3:4, :FRAME])                          # (8, 128)


# ------------------------------ wrappers ----------------------------------
@jax.jit
def vae_interp_batch(timbre1, timbre2, r, params):
    """timbre1, timbre2: (B, T) float; r: (B,) float -> (B, T) float32."""
    B = timbre1.shape[0]
    t1 = timbre1.reshape(B, NFRAMES, FRAME).astype(jnp.float32)
    t2 = timbre2.reshape(B, NFRAMES, FRAME).astype(jnp.float32)
    r_vec = jnp.asarray(r, jnp.float32).reshape(B)

    flops_per = 2 * (2 * NFRAMES * FRAME * 2 * NFREQ        # fused STFT+enc L1
                     + 4 * NFRAMES * HIDDEN * LATENT_PAD    # encoder layer 2
                     + 2 * NFRAMES * LATENT_PAD * HIDDEN    # decoder layer 1
                     + NFRAMES * 2 * HIDDEN * FRAME)        # fused dec L2+iDFT
    const_bytes = (params["w0"].size * 2 + params["wmid"].size * 2
                   + params["wvoc"].size * 2 + params["b"].size * 4)
    bytes_accessed = B * (3 * NFRAMES * FRAME * 4) + const_bytes

    grid_spec = pltpu.PrefetchScalarGridSpec(
        num_scalar_prefetch=1,
        grid=(B,),
        in_specs=[
            pl.BlockSpec((None, NFRAMES, FRAME), lambda b, r: (b, 0, 0)),
            pl.BlockSpec((None, NFRAMES, FRAME), lambda b, r: (b, 0, 0)),
            pl.BlockSpec((FRAME, 2 * NFREQ), lambda b, r: (0, 0)),
            pl.BlockSpec((2, HIDDEN, LATENT_PAD), lambda b, r: (0, 0, 0)),
            pl.BlockSpec((2 * HIDDEN, FRAME), lambda b, r: (0, 0)),
            pl.BlockSpec((4, 2 * NFREQ), lambda b, r: (0, 0)),
        ],
        out_specs=pl.BlockSpec((None, NFRAMES, FRAME), lambda b, r: (b, 0, 0)),
    )

    frames_out = pl.pallas_call(
        vae_interp_kernel,
        out_shape=jax.ShapeDtypeStruct((B, NFRAMES, FRAME), jnp.float32),
        grid_spec=grid_spec,
        compiler_params=pltpu.CompilerParams(
            dimension_semantics=("parallel",)),
        cost_estimate=pl.CostEstimate(flops=B * flops_per, transcendentals=0,
                                      bytes_accessed=bytes_accessed),
    )(r_vec, t1, t2, params["w0"], params["wmid"], params["wvoc"], params["b"])

    return frames_out.reshape(B, T)


def vae_interp(timbre1, timbre2, r, params):
    """Single-pair forward matching the original module signature: (T,)->(T,)."""
    out = vae_interp_batch(timbre1.reshape(1, T), timbre2.reshape(1, T),
                           jnp.asarray(r, jnp.float32).reshape(1), params)
    return out.reshape(T)


# ------------------------- deterministic params --------------------------
def make_params():
    def linear(key, fan_in, fan_out):
        kw, kb = jax.random.split(key)
        bound = 1.0 / jnp.sqrt(jnp.float32(fan_in))
        w = jax.random.uniform(kw, (fan_in, fan_out), jnp.float32, -bound, bound)
        b = jax.random.uniform(kb, (fan_out,), jnp.float32, -bound, bound)
        return w, b

    key = jax.random.PRNGKey(42)
    k_e1, k_e2, k_d1, k_d2 = jax.random.split(key, 4)

    we1, be1 = linear(k_e1, NFREQ, HIDDEN)         # (128,128), (128,)
    we2, be2 = linear(k_e2, HIDDEN, LATENT)        # (128, 64), (64,)
    wd1, bd1 = linear(k_d1, LATENT, HIDDEN)        # ( 64,128), (128,)
    wd2, bd2 = linear(k_d2, HIDDEN, NFREQ)         # (128,128), (128,)

    # lane-pad latent 64 -> 128 with zeros (exactly equivalent forward pass)
    pad = LATENT_PAD - LATENT
    we2p = jnp.pad(we2, ((0, 0), (0, pad)))
    be2p = jnp.pad(be2, ((0, pad),))
    wd1p = jnp.pad(wd1, ((0, pad), (0, 0)))

    # DFT / inverse-DFT bases (built in f32, then FOLDED into the dense
    # weights offline so no f32 operand ever reaches the MXU).
    n = jnp.arange(FRAME, dtype=jnp.float32)
    f = jnp.arange(NFREQ, dtype=jnp.float32)
    ang = 2.0 * jnp.pi * jnp.outer(n, f) / FRAME                  # (128,128)
    win = (0.5 - 0.5 * jnp.cos(2.0 * jnp.pi * n / FRAME))[:, None]  # Hann
    Cw = win * jnp.cos(ang)                                       # win * C
    Sw = -win * jnp.sin(ang)                                      # -win * S
    iC = jnp.cos(ang).T / FRAME
    iS = jnp.sin(ang).T / FRAME

    # fused [STFT -> encoder L1] weight:  h = relu(frames @ w0 + [be1|be1])
    w0 = jnp.concatenate([Cw @ we1, Sw @ we1], axis=1)            # (128, 256)

    # fused [decoder L2 -> iDFT] weight/bias:
    #   audio = [hd_re | hd_im] @ [wd2@iC ; -wd2@iS] + bd2@(iC - iS)
    wvoc = jnp.concatenate([wd2 @ iC, -(wd2 @ iS)], axis=0)       # (256, 128)
    bvoc = bd2 @ (iC - iS)                                        # (128,)

    wmid = jnp.stack([we2p, wd1p])                                # (2,128,128)

    b_slab = jnp.zeros((4, 2 * NFREQ), jnp.float32)
    b_slab = b_slab.at[0].set(jnp.concatenate([be1, be1]))
    b_slab = b_slab.at[1, :LATENT_PAD].set(be2p)
    b_slab = b_slab.at[2, :HIDDEN].set(bd1)
    b_slab = b_slab.at[3, :FRAME].set(bvoc)

    return dict(w0=w0.astype(jnp.bfloat16),
                wmid=wmid.astype(jnp.bfloat16),
                wvoc=wvoc.astype(jnp.bfloat16),
                b=b_slab)


if __name__ == "__main__":
    B = 4                                           # batched interpolation grid
    key = jax.random.PRNGKey(0)
    k1, k2 = jax.random.split(key)
    timbre1 = jax.random.normal(k1, (B, T), jnp.float32)
    timbre2 = jax.random.normal(k2, (B, T), jnp.float32)
    r = jnp.linspace(0.1, 0.9, B, dtype=jnp.float32)

    params = make_params()

    # batched path (grid=(B,), per-instance r via scalar prefetch)
    audio_batch = vae_interp_batch(timbre1, timbre2, r, params)
    jax.block_until_ready(audio_batch)
    assert audio_batch.shape == (B, T) and audio_batch.dtype == jnp.float32

    # single-pair path matching the original VAEInterp.forward signature
    audio_single = vae_interp(timbre1[0], timbre2[0], jnp.float32(0.3), params)
    jax.block_until_ready(audio_single)
    assert audio_single.shape == (T,) and audio_single.dtype == jnp.float32

    print("KERNEL_OK")
</pallas_src>

<mosaic_0001>
module attributes {stable_mosaic.version = 11 : i64} {
  func.func @vae_interp_kernel(%arg0: i32, %arg1: memref<4xf32, #tpu.memory_space<smem>>, %arg2: memref<1x8x128xf32, #tpu.memory_space<vmem>>, %arg3: memref<1x8x128xf32, #tpu.memory_space<vmem>>, %arg4: memref<128x256xbf16, #tpu.memory_space<vmem>>, %arg5: memref<2x128x128xbf16, #tpu.memory_space<vmem>>, %arg6: memref<256x128xbf16, #tpu.memory_space<vmem>>, %arg7: memref<4x256xf32, #tpu.memory_space<vmem>>, %arg8: memref<1x8x128xf32, #tpu.memory_space<vmem>>) attributes {dimension_semantics = [#tpu.dimension_semantics<parallel>], iteration_bounds = array<i64: 4>, scalar_prefetch = 1 : i64, scratch_operands = 0 : i64, tpu.core_type = #tpu.core_type<tc>, window_params = [{transform_indices = @transform_0, window_bounds = array<i64: 1, 8, 128>}, {transform_indices = @transform_1, window_bounds = array<i64: 1, 8, 128>}, {pipeline_mode = #tpu.pipeline_mode<synchronous>, transform_indices = @transform_2, window_bounds = array<i64: 128, 256>}, {pipeline_mode = #tpu.pipeline_mode<synchronous>, transform_indices = @transform_3, window_bounds = array<i64: 2, 128, 128>}, {pipeline_mode = #tpu.pipeline_mode<synchronous>, transform_indices = @transform_4, window_bounds = array<i64: 256, 128>}, {pipeline_mode = #tpu.pipeline_mode<synchronous>, transform_indices = @transform_5, window_bounds = array<i64: 4, 256>}, {transform_indices = @transform_6, window_bounds = array<i64: 1, 8, 128>}]} {
    %0 = arith.index_cast %arg0 : i32 to index
    %1 = memref.load %arg1[%0] : memref<4xf32, #tpu.memory_space<smem>>
    %c0 = arith.constant 0 : index
    %c0_0 = arith.constant 0 : index
    %c0_1 = arith.constant 0 : index
    %2 = vector.load %arg2[%c0, %c0_0, %c0_1] : memref<1x8x128xf32, #tpu.memory_space<vmem>>, vector<1x8x128xf32>
    %3 = vector.shape_cast %2 : vector<1x8x128xf32> to vector<8x128xf32>
    %c0_2 = arith.constant 0 : index
    %c0_3 = arith.constant 0 : index
    %c0_4 = arith.constant 0 : index
    %4 = vector.load %arg3[%c0_2, %c0_3, %c0_4] : memref<1x8x128xf32, #tpu.memory_space<vmem>>, vector<1x8x128xf32>
    %5 = vector.shape_cast %4 : vector<1x8x128xf32> to vector<8x128xf32>
    %6 = tpu.concatenate %3, %5 in 0 : vector<8x128xf32>, vector<8x128xf32> -> vector<16x128xf32>
    %7 = arith.truncf %6 : vector<16x128xf32> to vector<16x128xbf16>
    %c0_5 = arith.constant 0 : index
    %c0_6 = arith.constant 0 : index
    %8 = vector.load %arg4[%c0_5, %c0_6] : memref<128x256xbf16, #tpu.memory_space<vmem>>, vector<128x256xbf16>
    %cst = arith.constant dense<0.000000e+00> : vector<16x256xf32>
    %9 = tpu.matmul %7, %8, %cst {dimension_numbers = #tpu.dot_dimension_numbers<[1], [0], [0], [1], [0, 0, 1, 1], [], []>} : vector<16x128xbf16>, vector<128x256xbf16>, vector<16x256xf32> -> vector<16x256xf32>
    %c0_7 = arith.constant 0 : index
    %c0_8 = arith.constant 0 : index
    %10 = vector.load %arg7[%c0_7, %c0_8] : memref<4x256xf32, #tpu.memory_space<vmem>>, vector<1x256xf32>
    %11 = vector.broadcast %10 : vector<1x256xf32> to vector<16x256xf32>
    %12 = arith.addf %9, %11 : vector<16x256xf32>
    %cst_9 = arith.constant 0.000000e+00 : f32
    %13 = vector.broadcast %cst_9 : f32 to vector<16x256xf32>
    %14 = arith.maximumf %12, %13 : vector<16x256xf32>
    %15 = vector.extract_strided_slice %14 {offsets = [0, 0], sizes = [16, 128], strides = [1, 1]} : vector<16x256xf32> to vector<16x128xf32>
    %16 = vector.extract_strided_slice %14 {offsets = [0, 128], sizes = [16, 128], strides = [1, 1]} : vector<16x256xf32> to vector<16x128xf32>
    %17 = tpu.concatenate %15, %16 in 0 : vector<16x128xf32>, vector<16x128xf32> -> vector<32x128xf32>
    %18 = arith.truncf %17 : vector<32x128xf32> to vector<32x128xbf16>
    %c0_10 = arith.constant 0 : index
    %c0_11 = arith.constant 0 : index
    %c0_12 = arith.constant 0 : index
    %19 = vector.load %arg5[%c0_10, %c0_11, %c0_12] : memref<2x128x128xbf16, #tpu.memory_space<vmem>>, vector<1x128x128xbf16>
    %20 = vector.shape_cast %19 : vector<1x128x128xbf16> to vector<128x128xbf16>
    %cst_13 = arith.constant dense<0.000000e+00> : vector<32x128xf32>
    %21 = tpu.matmul %18, %20, %cst_13 {dimension_numbers = #tpu.dot_dimension_numbers<[1], [0], [0], [1], [0, 0, 1, 1], [], []>} : vector<32x128xbf16>, vector<128x128xbf16>, vector<32x128xf32> -> vector<32x128xf32>
    %c1 = arith.constant 1 : index
    %c0_14 = arith.constant 0 : index
    %22 = vector.load %arg7[%c1, %c0_14] : memref<4x256xf32, #tpu.memory_space<vmem>>, vector<1x128xf32>
    %23 = vector.broadcast %22 : vector<1x128xf32> to vector<32x128xf32>
    %24 = arith.addf %21, %23 : vector<32x128xf32>
    %25 = vector.extract_strided_slice %24 {offsets = [0, 0], sizes = [8, 128], strides = [1, 1]} : vector<32x128xf32> to vector<8x128xf32>
    %26 = vector.extract_strided_slice %24 {offsets = [8, 0], sizes = [8, 128], strides = [1, 1]} : vector<32x128xf32> to vector<8x128xf32>
    %27 = vector.extract_strided_slice %24 {offsets = [16, 0], sizes = [8, 128], strides = [1, 1]} : vector<32x128xf32> to vector<8x128xf32>
    %28 = vector.extract_strided_slice %24 {offsets = [24, 0], sizes = [8, 128], strides = [1, 1]} : vector<32x128xf32> to vector<8x128xf32>
    %29 = arith.subf %25, %26 : vector<8x128xf32>
    %30 = vector.broadcast %1 : f32 to vector<8x128xf32>
    %31 = arith.mulf %30, %29 : vector<8x128xf32>
    %32 = arith.addf %26, %31 : vector<8x128xf32>
    %33 = arith.subf %27, %28 : vector<8x128xf32>
    %34 = vector.broadcast %1 : f32 to vector<8x128xf32>
    %35 = arith.mulf %34, %33 : vector<8x128xf32>
    %36 = arith.addf %28, %35 : vector<8x128xf32>
    %37 = tpu.concatenate %32, %36 in 0 : vector<8x128xf32>, vector<8x128xf32> -> vector<16x128xf32>
    %38 = arith.truncf %37 : vector<16x128xf32> to vector<16x128xbf16>
    %c1_15 = arith.constant 1 : index
    %c0_16 = arith.constant 0 : index
    %c0_17 = arith.constant 0 : index
    %39 = vector.load %arg5[%c1_15, %c0_16, %c0_17] : memref<2x128x128xbf16, #tpu.memory_space<vmem>>, vector<1x128x128xbf16>
    %40 = vector.shape_cast %39 : vector<1x128x128xbf16> to vector<128x128xbf16>
    %cst_18 = arith.constant dense<0.000000e+00> : vector<16x128xf32>
    %41 = tpu.matmul %38, %40, %cst_18 {dimension_numbers = #tpu.dot_dimension_numbers<[1], [0], [0], [1], [0, 0, 1, 1], [], []>} : vector<16x128xbf16>, vector<128x128xbf16>, vector<16x128xf32> -> vector<16x128xf32>
    %c2 = arith.constant 2 : index
    %c0_19 = arith.constant 0 : index
    %42 = vector.load %arg7[%c2, %c0_19] : memref<4x256xf32, #tpu.memory_space<vmem>>, vector<1x128xf32>
    %43 = vector.broadcast %42 : vector<1x128xf32> to vector<16x128xf32>
    %44 = arith.addf %41, %43 : vector<16x128xf32>
    %cst_20 = arith.constant 0.000000e+00 : f32
    %45 = vector.broadcast %cst_20 : f32 to vector<16x128xf32>
    %46 = arith.maximumf %44, %45 : vector<16x128xf32>
    %47 = vector.extract_strided_slice %46 {offsets = [0, 0], sizes = [8, 128], strides = [1, 1]} : vector<16x128xf32> to vector<8x128xf32>
    %48 = vector.extract_strided_slice %46 {offsets = [8, 0], sizes = [8, 128], strides = [1, 1]} : vector<16x128xf32> to vector<8x128xf32>
    %49 = tpu.concatenate %47, %48 in 1 : vector<8x128xf32>, vector<8x128xf32> -> vector<8x256xf32>
    %50 = arith.truncf %49 : vector<8x256xf32> to vector<8x256xbf16>
    %c0_21 = arith.constant 0 : index
    %c0_22 = arith.constant 0 : index
    %51 = vector.load %arg6[%c0_21, %c0_22] : memref<256x128xbf16, #tpu.memory_space<vmem>>, vector<256x128xbf16>
    %cst_23 = arith.constant dense<0.000000e+00> : vector<8x128xf32>
    %52 = tpu.matmul %50, %51, %cst_23 {dimension_numbers = #tpu.dot_dimension_numbers<[1], [0], [0], [1], [0, 0, 1, 1], [], []>} : vector<8x256xbf16>, vector<256x128xbf16>, vector<8x128xf32> -> vector<8x128xf32>
    %c3 = arith.constant 3 : index
    %c0_24 = arith.constant 0 : index
    %53 = vector.load %arg7[%c3, %c0_24] : memref<4x256xf32, #tpu.memory_space<vmem>>, vector<1x128xf32>
    %54 = vector.broadcast %53 : vector<1x128xf32> to vector<8x128xf32>
    %55 = arith.addf %52, %54 : vector<8x128xf32>
    %c0_25 = arith.constant 0 : index
    %c0_26 = arith.constant 0 : index
    %c0_27 = arith.constant 0 : index
    %56 = vector.load %arg8[%c0_25, %c0_26, %c0_27] : memref<1x8x128xf32, #tpu.memory_space<vmem>>, vector<1x8x128xf32>
    %57 = vector.shape_cast %56 : vector<1x8x128xf32> to vector<8x128xf32>
    %58 = vector.shape_cast %55 : vector<8x128xf32> to vector<1x8x128xf32>
    tpu.vector_store %arg8[%c0_25, %c0_26, %c0_27], %58 {strides = array<i32>} : memref<1x8x128xf32, #tpu.memory_space<vmem>>, vector<1x8x128xf32>,
    return
  }
  func.func @transform_0(%arg0: i32, %arg1: memref<4xf32, #tpu.memory_space<smem>>) -> (i32, i32, i32) {
    %c0_i32 = arith.constant 0 : i32
    %c0_i32_0 = arith.constant 0 : i32
    %c0_i32_1 = arith.constant 0 : i32
    return %arg0, %c0_i32, %c0_i32_0 : i32, i32, i32
  }
  func.func @transform_1(%arg0: i32, %arg1: memref<4xf32, #tpu.memory_space<smem>>) -> (i32, i32, i32) {
    %c0_i32 = arith.constant 0 : i32
    %c0_i32_0 = arith.constant 0 : i32
    %c0_i32_1 = arith.constant 0 : i32
    return %arg0, %c0_i32, %c0_i32_0 : i32, i32, i32
  }
  func.func @transform_2(%arg0: i32, %arg1: memref<4xf32, #tpu.memory_space<smem>>) -> (i32, i32) {
    %c0_i32 = arith.constant 0 : i32
    %c0_i32_0 = arith.constant 0 : i32
    %c0_i32_1 = arith.constant 0 : i32
    return %c0_i32, %c0_i32_0 : i32, i32
  }
  func.func @transform_3(%arg0: i32, %arg1: memref<4xf32, #tpu.memory_space<smem>>) -> (i32, i32, i32) {
    %c0_i32 = arith.constant 0 : i32
    %c0_i32_0 = arith.constant 0 : i32
    %c0_i32_1 = arith.constant 0 : i32
    %c0_i32_2 = arith.constant 0 : i32
    return %c0_i32, %c0_i32_0, %c0_i32_1 : i32, i32, i32
  }
  func.func @transform_4(%arg0: i32, %arg1: memref<4xf32, #tpu.memory_space<smem>>) -> (i32, i32) {
    %c0_i32 = arith.constant 0 : i32
    %c0_i32_0 = arith.constant 0 : i32
    %c0_i32_1 = arith.constant 0 : i32
    return %c0_i32, %c0_i32_0 : i32, i32
  }
  func.func @transform_5(%arg0: i32, %arg1: memref<4xf32, #tpu.memory_space<smem>>) -> (i32, i32) {
    %c0_i32 = arith.constant 0 : i32
    %c0_i32_0 = arith.constant 0 : i32
    %c0_i32_1 = arith.constant 0 : i32
    return %c0_i32, %c0_i32_0 : i32, i32
  }
  func.func @transform_6(%arg0: i32, %arg1: memref<4xf32, #tpu.memory_space<smem>>) -> (i32, i32, i32) {
    %c0_i32 = arith.constant 0 : i32
    %c0_i32_0 = arith.constant 0 : i32
    %c0_i32_1 = arith.constant 0 : i32
    return %arg0, %c0_i32, %c0_i32_0 : i32, i32, i32
  }
}

</mosaic_0001>

<llo_original>
// kernel: vae_interp_batch.1
$region0: #{vae_interp_batch.1}
  #allocation0 [shape = 'u32[]', space=smem, size = 0x4, offset = 0x4, fixed_abs, tag = 'smem constant byte address 0x4 - core index']
  #allocation1 [shape = 'u32[72,128]{1,0:T(1,128)}', space=vmem, size = 0x9000, scoped, tag = 'internal scratch']
  #allocation2 [shape = 's32[1]{0}', space=sflag, size = 0x4, scoped, tag = 'scoped memory for vae_interp_batch.1']
  #allocation3 [shape = 'u8[512]{0}', space=smem, size = 0x200, scoped, tag = 'prefetched SMEM operand 0']
  %s0 = inlined_call_operand.vmem [shape: f32[4], index: 0, kind: input, shape index: {}]
  %s1 = inlined_call_operand.vmem [shape: f32[4,8,128], index: 1, kind: input, shape index: {}]
  %s2 = inlined_call_operand.vmem [shape: f32[4,8,128], index: 2, kind: input, shape index: {}]
  %s3 = inlined_call_operand.vmem [shape: bf16[128,256], index: 3, kind: input, shape index: {}]
  %s4 = inlined_call_operand.hbm [shape: bf16[2,128,128], index: 4, kind: input, shape index: {}]
  %s5 = inlined_call_operand.hbm [shape: bf16[256,128], index: 5, kind: input, shape index: {}]
  %s6 = inlined_call_operand.hbm [shape: f32[4,256], index: 6, kind: input, shape index: {}]
  %s7 = inlined_call_operand.vmem [shape: f32[4,8,128], index: 7, kind: output, shape index: {}]
  %s8 = sld [smem:[#allocation0]]
  $region69: #{vae_interp_batch.1} parent=0
    _
  %s10 = ssub.s32 1, %s8
  %s11 = scalar_select 0, %s10, %s8
  %s13 = sshll.u32 %s0, 4
  %s14 = int_to_ptr.vmem [resolvable:$true] %s13
  %16 = dma.vmem_to_smem %s14, 16, [#allocation3], [#allocation2]
  %18 = dma.done [#allocation2], 16
  %19 = sfence
  $region1: #{vae_interp_batch.1} parent=0
    #allocation4 [shape = 'u8[65536]{0}', space=vmem, size = 0x10000, scoped, tag = 'input window, operand 4, single buffered']
    #allocation5 [shape = 's32[2]{0}', space=sflag, size = 0x8, scoped, tag = 'scoped memory for vae_interp_batch.1']
    #allocation6 [shape = 'u8[65536]{0}', space=vmem, size = 0x10000, scoped, tag = 'input window, operand 5, single buffered']
    #allocation7 [shape = 's32[1]{0}', space=sflag, size = 0x4, scoped, tag = 'scoped memory for vae_interp_batch.1']
    #allocation8 [shape = 'u8[4096]{0}', space=vmem, size = 0x1000, scoped, tag = 'input window, operand 6, single buffered']
    %20 = vsyncpa [#allocation5], 0
    %21 = vsyncpa [#allocation7], 0
    loop: start=0, step=1, limit=6
    $region2: #{vae_interp_batch.1} parent=1 // loop_pre_header
      _
    $region3: #{vae_interp_batch.1} parent=1 // loop_header
      %s23 = sphi 0, %s27
      %p24 = scmp.ge.s32.totalorder %s23, 6
      %s33 = sphi 0, %s35
      %s36 = sphi 0, %s33
      %s37 = sphi 0, %s36
      %s53 = sphi 0, %s37
      %s59 = sphi 0, %s61
      %s62 = sphi 0, %s59
      %s63 = sphi 0, %s62
      %s79 = sphi 0, %s63
      %s83 = sphi 0, %s83
      %s85 = sphi 0, %s83
      %s86 = sphi 0, %s85
      %s100 = sphi 0, %s86
      %s104 = sphi 0, %s104
      %s106 = sphi 0, %s104
      %s107 = sphi 0, %s106
      %s121 = sphi 0, %s107
      %s125 = sphi 0, %s125
      %s127 = sphi 0, %s125
      %s128 = sphi 0, %s127
      %s142 = sphi 0, %s128
      %s146 = sphi 0, %s146
      %s148 = sphi 0, %s146
      %s149 = sphi 0, %s148
      %s163 = sphi 0, %s149
      %s169 = sphi 0, %s171
      %s172 = sphi 0, %s169
      %s173 = sphi 0, %s172
      %s189 = sphi 0, %s173
    $region4: #{vae_interp_batch.1} parent=1 // loop_header_branch
      %26 = sbr.rel (%p24) target = $region8
    $region5: #{vae_interp_batch.1} parent=1 // loop_body
      %s28 = ssub.s32 %s23, 1
      %s29 = ssub.s32 %s23, 2
      %s30 = sadd.s32 %s23, 1
      %s31 = ssub.s32 %s23, %s30
      %p32 = scmp.eq.s32.totalorder %s31, 0
      %s34 = sadd.s32 %s33, 1
      %s35 = scalar_select %p32, %s33, %s34
      %p38 = pneg %p32
      %p39 = scmp.eq.s32.totalorder %s23, 3
      %p40 = por %p38, %p39
      %p41 = scmp.ne.s32.totalorder %s33, %s36
      %p42 = scmp.eq.s32.totalorder %s23, 0
      %p43 = por %p41, %p42
      %p44 = scmp.ne.s32.totalorder %s33, %s36
      %p45 = scmp.eq.s32.totalorder %s28, 3
      %p46 = por %p44, %p45
      %p47 = scmp.ne.s32.totalorder %s36, %s37
      %p48 = scmp.eq.s32.totalorder %s28, 0
      %p49 = por %p47, %p48
      %p50 = scmp.ne.s32.totalorder %s36, %s37
      %p51 = scmp.eq.s32.totalorder %s29, 3
      %p52 = por %p50, %p51
      %p54 = scmp.ne.s32.totalorder %s37, %s53
      %p55 = scmp.eq.s32.totalorder %s29, 0
      %p56 = por %p54, %p55
      %s57 = ssub.s32 %s23, %s30
      %p58 = scmp.eq.s32.totalorder %s57, 0
      %s60 = sadd.s32 %s59, 1
      %s61 = scalar_select %p58, %s59, %s60
      %p64 = pneg %p58
      %p65 = scmp.eq.s32.totalorder %s23, 3
      %p66 = por %p64, %p65
      %p67 = scmp.ne.s32.totalorder %s59, %s62
      %p68 = scmp.eq.s32.totalorder %s23, 0
      %p69 = por %p67, %p68
      %p70 = scmp.ne.s32.totalorder %s59, %s62
      %p71 = scmp.eq.s32.totalorder %s28, 3
      %p72 = por %p70, %p71
      %p73 = scmp.ne.s32.totalorder %s62, %s63
      %p74 = scmp.eq.s32.totalorder %s28, 0
      %p75 = por %p73, %p74
      %p76 = scmp.ne.s32.totalorder %s62, %s63
      %p77 = scmp.eq.s32.totalorder %s29, 3
      %p78 = por %p76, %p77
      %p80 = scmp.ne.s32.totalorder %s63, %s79
      %p81 = scmp.eq.s32.totalorder %s29, 0
      %p82 = por %p80, %p81
      %s84 = sadd.s32 %s83, 1
      %p87 = scmp.eq.s32.totalorder %s23, 3
      %p88 = scmp.ne.s32.totalorder %s83, %s85
      %p89 = scmp.eq.s32.totalorder %s23, 0
      %p90 = por %p88, %p89
      %p91 = scmp.ne.s32.totalorder %s83, %s85
      %p92 = scmp.eq.s32.totalorder %s28, 3
      %p93 = por %p91, %p92
      %p94 = scmp.ne.s32.totalorder %s85, %s86
      %p95 = scmp.eq.s32.totalorder %s28, 0
      %p96 = por %p94, %p95
      %p97 = scmp.ne.s32.totalorder %s85, %s86
      %p98 = scmp.eq.s32.totalorder %s29, 3
      %p99 = por %p97, %p98
      %p101 = scmp.ne.s32.totalorder %s86, %s100
      %p102 = scmp.eq.s32.totalorder %s29, 0
      %p103 = por %p101, %p102
      %s105 = sadd.s32 %s104, 1
      %p108 = scmp.eq.s32.totalorder %s23, 3
      %p109 = scmp.ne.s32.totalorder %s104, %s106
      %p110 = scmp.eq.s32.totalorder %s23, 0
      %p111 = por %p109, %p110
      %p112 = scmp.ne.s32.totalorder %s104, %s106
      %p113 = scmp.eq.s32.totalorder %s28, 3
      %p114 = por %p112, %p113
      %p115 = scmp.ne.s32.totalorder %s106, %s107
      %p116 = scmp.eq.s32.totalorder %s28, 0
      %p117 = por %p115, %p116
      %p118 = scmp.ne.s32.totalorder %s106, %s107
      %p119 = scmp.eq.s32.totalorder %s29, 3
      %p120 = por %p118, %p119
      %p122 = scmp.ne.s32.totalorder %s107, %s121
      %p123 = scmp.eq.s32.totalorder %s29, 0
      %p124 = por %p122, %p123
      %s126 = sadd.s32 %s125, 1
      %p129 = scmp.eq.s32.totalorder %s23, 3
      %p130 = scmp.ne.s32.totalorder %s125, %s127
      %p131 = scmp.eq.s32.totalorder %s23, 0
      %p132 = por %p130, %p131
      %p133 = scmp.ne.s32.totalorder %s125, %s127
      %p134 = scmp.eq.s32.totalorder %s28, 3
      %p135 = por %p133, %p134
      %p136 = scmp.ne.s32.totalorder %s127, %s128
      %p137 = scmp.eq.s32.totalorder %s28, 0
      %p138 = por %p136, %p137
      %p139 = scmp.ne.s32.totalorder %s127, %s128
      %p140 = scmp.eq.s32.totalorder %s29, 3
      %p141 = por %p139, %p140
      %p143 = scmp.ne.s32.totalorder %s128, %s142
      %p144 = scmp.eq.s32.totalorder %s29, 0
      %p145 = por %p143, %p144
      %s147 = sadd.s32 %s146, 1
      %p150 = scmp.eq.s32.totalorder %s23, 3
      %p151 = scmp.ne.s32.totalorder %s146, %s148
      %p152 = scmp.eq.s32.totalorder %s23, 0
      %p153 = por %p151, %p152
      %p154 = scmp.ne.s32.totalorder %s146, %s148
      %p155 = scmp.eq.s32.totalorder %s28, 3
      %p156 = por %p154, %p155
      %p157 = scmp.ne.s32.totalorder %s148, %s149
      %p158 = scmp.eq.s32.totalorder %s28, 0
      %p159 = por %p157, %p158
      %p160 = scmp.ne.s32.totalorder %s148, %s149
      %p161 = scmp.eq.s32.totalorder %s29, 3
      %p162 = por %p160, %p161
      %p164 = scmp.ne.s32.totalorder %s149, %s163
      %p165 = scmp.eq.s32.totalorder %s29, 0
      %p166 = por %p164, %p165
      %s167 = ssub.s32 %s23, %s30
      %p168 = scmp.eq.s32.totalorder %s167, 0
      %s170 = sadd.s32 %s169, 1
      %s171 = scalar_select %p168, %s169, %s170
      %p174 = pneg %p168
      %p175 = scmp.eq.s32.totalorder %s23, 3
      %p176 = por %p174, %p175
      %p177 = scmp.ne.s32.totalorder %s169, %s172
      %p178 = scmp.eq.s32.totalorder %s23, 0
      %p179 = por %p177, %p178
      %p180 = scmp.ne.s32.totalorder %s169, %s172
      %p181 = scmp.eq.s32.totalorder %s28, 3
      %p182 = por %p180, %p181
      %p183 = scmp.ne.s32.totalorder %s172, %s173
      %p184 = scmp.eq.s32.totalorder %s28, 0
      %p185 = por %p183, %p184
      %p186 = scmp.ne.s32.totalorder %s172, %s173
      %p187 = scmp.eq.s32.totalorder %s29, 3
      %p188 = por %p186, %p187
      %p190 = scmp.ne.s32.totalorder %s173, %s189
      %p191 = scmp.eq.s32.totalorder %s29, 0
      %p192 = por %p190, %p191
      %p193 = scmp.le.s32.totalorder 1, %s23
      %p194 = scmp.lt.s32.totalorder %s23, 5
      %p195 = pnand %p193, %p194
      %p196 = pneg %p195
      // Predicated region
      $region9: #{vae_interp_batch.1} parent=5 // pred_check
        _
      $region10: #{vae_interp_batch.1} parent=5 // pred_check_branch
        %198 = sbr.rel (%p195) target = $region12
      $region11: #{vae_interp_batch.1} parent=5 // pred_region
        %s199 = ssub.s32 %s23, 1
        // Predicated region
        $region13: #{vae_interp_batch.1} parent=11 // pred_check
          %p200 = pneg %p96
        $region14: #{vae_interp_batch.1} parent=11 // pred_check_branch
          %202 = sbr.rel (%p200) target = $region16
        $region15: #{vae_interp_batch.1} parent=11 // pred_region
          _
        $region16: #{vae_interp_batch.1} parent=11 // pred_fallthru
          _
        // Predicated region
        $region17: #{vae_interp_batch.1} parent=11 // pred_check
          %p203 = pneg %p117
        $region18: #{vae_interp_batch.1} parent=11 // pred_check_branch
          %205 = sbr.rel (%p203) target = $region20
        $region19: #{vae_interp_batch.1} parent=11 // pred_region
          %207 = vsyncadd [#allocation5], 0
          %s208 = sshll.u32 %s4, 4
          %s209 = int_to_ptr.hbm [resolvable:$true] %s208
          %s210 = sshll.u32 [#allocation4], 4
          %s211 = int_to_ptr.vmem [resolvable:$true] %s210
          %216 = dma.hbm_to_vmem [thread:$0]  %s209, 2048, %s211, [#allocation5], 64, 64, 4
        $region20: #{vae_interp_batch.1} parent=11 // pred_fallthru
          _
        // Predicated region
        $region21: #{vae_interp_batch.1} parent=11 // pred_check
          %p217 = pneg %p138
        $region22: #{vae_interp_batch.1} parent=11 // pred_check_branch
          %219 = sbr.rel (%p217) target = $region24
        $region23: #{vae_interp_batch.1} parent=11 // pred_region
          %221 = vsyncadd [#allocation7], 0
          %s222 = sshll.u32 %s5, 4
          %s223 = int_to_ptr.hbm [resolvable:$true] %s222
          %s224 = sshll.u32 [#allocation6], 4
          %s225 = int_to_ptr.vmem [resolvable:$true] %s224
          %230 = dma.hbm_to_vmem [thread:$0]  %s223, 2048, %s225, [#allocation7], 64, 64, 4
        $region24: #{vae_interp_batch.1} parent=11 // pred_fallthru
          _
        // Predicated region
        $region25: #{vae_interp_batch.1} parent=11 // pred_check
          %p231 = pneg %p159
        $region26: #{vae_interp_batch.1} parent=11 // pred_check_branch
          %233 = sbr.rel (%p231) target = $region28
        $region27: #{vae_interp_batch.1} parent=11 // pred_region
          %235 = vsyncadd [#allocation7], 0
          %s237 = sshll.u32 %s6, 4
          %s238 = int_to_ptr.hbm [resolvable:$true] %s237
          %s239 = sshll.u32 [#allocation8], 4
          %s240 = int_to_ptr.vmem [resolvable:$true] %s239
          %242 = dma.hbm_to_vmem [thread:$0]  %s238, 128, %s240, [#allocation7]
        $region28: #{vae_interp_batch.1} parent=11 // pred_fallthru
          _
      $region12: #{vae_interp_batch.1} parent=5 // pred_fallthru
        _
      %p243 = scmp.lt.s32.totalorder %s23, 4
      // Predicated region
      $region29: #{vae_interp_batch.1} parent=5 // pred_check
        %p244 = pneg %p243
      $region30: #{vae_interp_batch.1} parent=5 // pred_check_branch
        %246 = sbr.rel (%p244) target = $region32
      $region31: #{vae_interp_batch.1} parent=5 // pred_region
        // Predicated region
        $region33: #{vae_interp_batch.1} parent=31 // pred_check
          %p247 = pneg %p43
        $region34: #{vae_interp_batch.1} parent=31 // pred_check_branch
          %249 = sbr.rel (%p247) target = $region36
        $region35: #{vae_interp_batch.1} parent=31 // pred_region
          %p250 = scmp.lt.s32.totalorder %s23, 3
          %s251 = scalar_select %p250, %s23, 3
          %s252 = smul.addr %s251, 8
          %s253 = scalar_lea.vmem %s1, %s252
        $region36: #{vae_interp_batch.1} parent=31 // pred_fallthru
          _
        // Predicated region
        $region37: #{vae_interp_batch.1} parent=31 // pred_check
          %p254 = pneg %p69
        $region38: #{vae_interp_batch.1} parent=31 // pred_check_branch
          %256 = sbr.rel (%p254) target = $region40
        $region39: #{vae_interp_batch.1} parent=31 // pred_region
          %p257 = scmp.lt.s32.totalorder %s23, 3
          %s258 = scalar_select %p257, %s23, 3
          %s259 = smul.addr %s258, 8
          %s260 = scalar_lea.vmem %s2, %s259
        $region40: #{vae_interp_batch.1} parent=31 // pred_fallthru
          _
      $region32: #{vae_interp_batch.1} parent=5 // pred_fallthru
        _
      %p261 = scmp.le.s32.totalorder 1, %s23
      %p262 = scmp.lt.s32.totalorder %s23, 5
      %p263 = pnand %p261, %p262
      %p264 = pneg %p263
      // Predicated region
      $region41: #{vae_interp_batch.1} parent=5 // pred_check
        _
      $region42: #{vae_interp_batch.1} parent=5 // pred_check_branch
        %266 = sbr.rel (%p263) target = $region44
      $region43: #{vae_interp_batch.1} parent=5 // pred_region
        %s267 = ssub.s32 %s23, 1
        // Predicated region
        $region45: #{vae_interp_batch.1} parent=43 // pred_check
          %p268 = pneg %p117
        $region46: #{vae_interp_batch.1} parent=43 // pred_check_branch
          %270 = sbr.rel (%p268) target = $region48
        $region47: #{vae_interp_batch.1} parent=43 // pred_region
          %272 = dma.done [#allocation5], 2048
        $region48: #{vae_interp_batch.1} parent=43 // pred_fallthru
          _
        // Predicated region
        $region49: #{vae_interp_batch.1} parent=43 // pred_check
          %p273 = pneg %p138
        $region50: #{vae_interp_batch.1} parent=43 // pred_check_branch
          %275 = sbr.rel (%p273) target = $region52
        $region51: #{vae_interp_batch.1} parent=43 // pred_region
          %277 = dma.done [#allocation7], 2048
        $region52: #{vae_interp_batch.1} parent=43 // pred_fallthru
          _
        // Predicated region
        $region53: #{vae_interp_batch.1} parent=43 // pred_check
          %p278 = pneg %p159
        $region54: #{vae_interp_batch.1} parent=43 // pred_check_branch
          %280 = sbr.rel (%p278) target = $region56
        $region55: #{vae_interp_batch.1} parent=43 // pred_region
          %282 = dma.done [#allocation7], 128
        $region56: #{vae_interp_batch.1} parent=43 // pred_fallthru
          _
        %p283 = scmp.lt.s32.totalorder %s28, 3
        %s284 = scalar_select %p283, %s28, 3
        %s285 = smul.addr %s284, 8
        %s286 = scalar_lea.vmem %s1, %s285
        %p287 = pneg %p49
        %p288 = pneg %p46
        %p289 = scmp.lt.s32.totalorder %s28, 3
        %s290 = scalar_select %p289, %s28, 3
        %s291 = smul.addr %s290, 8
        %s292 = scalar_lea.vmem %s2, %s291
        %p293 = pneg %p75
        %p294 = pneg %p72
        %p295 = pneg %p96
        %p296 = pneg %p93
        %p297 = pneg %p117
        %p298 = pneg %p114
        %p299 = pneg %p138
        %p300 = pneg %p135
        %p301 = pneg %p159
        %p302 = pneg %p156
        %p303 = pneg %p185
        %p304 = pneg %p182
        %p305 = scmp.lt.s32.totalorder %s28, 3
        %s306 = scalar_select %p305, %s28, 3
        %s307 = smul.addr %s306, 8
        %s308 = scalar_lea.vmem %s7, %s307
        %p309 = scmp.lt.s32.totalorder %s28, 3
        %s310 = scalar_select %p309, %s28, 3
        %s311 = smul.addr %s310, 8
        %s312 = scalar_lea.vmem %s1, %s311
        %p313 = scmp.lt.s32.totalorder %s28, 3
        %s314 = scalar_select %p313, %s28, 3
        %s315 = smul.addr %s314, 8
        %s316 = scalar_lea.vmem %s2, %s315
        %p317 = scmp.lt.s32.totalorder %s28, 3
        %s318 = scalar_select %p317, %s28, 3
        %s319 = smul.addr %s318, 8
        %s320 = scalar_lea.vmem %s7, %s319
        %s321 = sld [smem:[#allocation3 + %s28]]
        %v322 = vld [vmem:[%s312] sm:$0xff]
        %v323 = vld [vmem:[%s316] sm:$0xff]
        %v324 = vpack.c.bf16 %v323, %v322
        %v325 = vld [vmem:[%s3] sm:$0xff]
        %v326 = vld [vmem:[%s3 + $0x8] sm:$0xff]
        %v327 = vld [vmem:[%s3 + $0x10] sm:$0xff]
        %v328 = vld [vmem:[%s3 + $0x18] sm:$0xff]
        %v329 = vld [vmem:[%s3 + $0x20] sm:$0xff]
        %v330 = vld [vmem:[%s3 + $0x28] sm:$0xff]
        %v331 = vld [vmem:[%s3 + $0x30] sm:$0xff]
        %v332 = vld [vmem:[%s3 + $0x38] sm:$0xff]
        %v333 = vld [vmem:[%s3 + $0x40] sm:$0xff]
        %v334 = vld [vmem:[%s3 + $0x48] sm:$0xff]
        %v335 = vld [vmem:[%s3 + $0x50] sm:$0xff]
        %v336 = vld [vmem:[%s3 + $0x58] sm:$0xff]
        %v337 = vld [vmem:[%s3 + $0x60] sm:$0xff]
        %v338 = vld [vmem:[%s3 + $0x68] sm:$0xff]
        %v339 = vld [vmem:[%s3 + $0x70] sm:$0xff]
        %v340 = vld [vmem:[%s3 + $0x78] sm:$0xff]
        %v341 = vld [vmem:[#allocation8] ss:$4 sm:$0x3]
        %v343 = vperm.slane %v341, 0
        %v344 = vperm.slane %v341, 1
        %v363 = vunpack.c.l.b16 %v325
        %v364 = vunpack.c.h.b16 %v325
        %v365 = vunpack.c.l.b16 %v326
        %v366 = vunpack.c.h.b16 %v326
        %v367 = vunpack.c.l.b16 %v327
        %v368 = vunpack.c.h.b16 %v327
        %v369 = vunpack.c.l.b16 %v328
        %v370 = vunpack.c.h.b16 %v328
        %v371 = vunpack.c.l.b16 %v329
        %v372 = vunpack.c.h.b16 %v329
        %v373 = vunpack.c.l.b16 %v330
        %v374 = vunpack.c.h.b16 %v330
        %v375 = vunpack.c.l.b16 %v331
        %v376 = vunpack.c.h.b16 %v331
        %v377 = vunpack.c.l.b16 %v332
        %v378 = vunpack.c.h.b16 %v332
        %v379 = vunpack.c.l.b16 %v333
        %v380 = vunpack.c.h.b16 %v333
        %v381 = vunpack.c.l.b16 %v334
        %v382 = vunpack.c.h.b16 %v334
        %v383 = vunpack.c.l.b16 %v335
        %v384 = vunpack.c.h.b16 %v335
        %v385 = vunpack.c.l.b16 %v336
        %v386 = vunpack.c.h.b16 %v336
        %v387 = vunpack.c.l.b16 %v337
        %v388 = vunpack.c.h.b16 %v337
        %v389 = vunpack.c.l.b16 %v338
        %v390 = vunpack.c.h.b16 %v338
        %v391 = vunpack.c.l.b16 %v339
        %v392 = vunpack.c.h.b16 %v339
        %v393 = vunpack.c.l.b16 %v340
        %v394 = vunpack.c.h.b16 %v340
        %v395 = vpack.c.b16 %v365, %v363
        %v396 = vpack.c.b16 %v366, %v364
        %v397 = vpack.c.b16 %v369, %v367
        %v398 = vpack.c.b16 %v370, %v368
        %v399 = vpack.c.b16 %v373, %v371
        %v400 = vpack.c.b16 %v374, %v372
        %v401 = vpack.c.b16 %v377, %v375
        %v402 = vpack.c.b16 %v378, %v376
        %v403 = vpack.c.b16 %v381, %v379
        %v404 = vpack.c.b16 %v382, %v380
        %v405 = vpack.c.b16 %v385, %v383
        %v406 = vpack.c.b16 %v386, %v384
        %v407 = vpack.c.b16 %v389, %v387
        %v408 = vpack.c.b16 %v390, %v388
        %v409 = vpack.c.b16 %v393, %v391
        %v410 = vpack.c.b16 %v394, %v392
        %427 = vmatpush.bf16.msra.mxu0 %v409
        %428 = vmatpush.bf16.msra.mxu0 %v407
        %429 = vmatpush.bf16.msra.mxu0 %v405
        %430 = vmatpush.bf16.msra.mxu0 %v403
        %431 = vmatpush.bf16.msra.mxu0 %v401
        %432 = vmatpush.bf16.msra.mxu0 %v399
        %433 = vmatpush.bf16.msra.mxu0 %v397
        %434 = vmatpush.bf16.msra.mxu0 %v395
        %435 = vmatmul.bf16.gmra.mxu0 %v324
        %v436 = vpop.f32.mrf.mxu0
        %v437 = vadd.f32 %v343, %v436
        %v438 = vpop.f32.mrf.mxu0
        %v439 = vadd.f32 %v343, %v438
        %440 = vdwg.mxu0
        %441 = vmatpush.bf16.msra.mxu0 %v410
        %442 = vmatpush.bf16.msra.mxu0 %v408
        %443 = vmatpush.bf16.msra.mxu0 %v406
        %444 = vmatpush.bf16.msra.mxu0 %v404
        %445 = vmatpush.bf16.msra.mxu0 %v402
        %446 = vmatpush.bf16.msra.mxu0 %v400
        %447 = vmatpush.bf16.msra.mxu0 %v398
        %448 = vmatpush.bf16.msra.mxu0 %v396
        %449 = vmatmul.bf16.gmra.mxu0 %v324
        %v450 = vpop.f32.mrf.mxu0
        %v451 = vadd.f32 %v344, %v450
        %v452 = vpop.f32.mrf.mxu0
        %v453 = vadd.f32 %v344, %v452
        %454 = vdwg.mxu0
        %v455 = vmax.f32 %v437, 0.0
        %v456 = vmax.f32 %v451, 0.0
        %v457 = vmax.f32 %v439, 0.0
        %v458 = vmax.f32 %v453, 0.0
        %v459 = vpack.c.bf16 %v457, %v455
        %v460 = vpack.c.bf16 %v458, %v456
        %v461 = vld [vmem:[#allocation4] sm:$0xf]
        %v462 = vld [vmem:[#allocation4 + $0x4] sm:$0xf]
        %v463 = vld [vmem:[#allocation4 + $0x8] sm:$0xf]
        %v464 = vld [vmem:[#allocation4 + $0xc] sm:$0xf]
        %v465 = vld [vmem:[#allocation4 + $0x10] sm:$0xf]
        %v466 = vld [vmem:[#allocation4 + $0x14] sm:$0xf]
        %v467 = vld [vmem:[#allocation4 + $0x18] sm:$0xf]
        %v468 = vld [vmem:[#allocation4 + $0x1c] sm:$0xf]
        %v469 = vld [vmem:[#allocation4 + $0x20] sm:$0xf]
        %v470 = vld [vmem:[#allocation4 + $0x24] sm:$0xf]
        %v471 = vld [vmem:[#allocation4 + $0x28] sm:$0xf]
        %v472 = vld [vmem:[#allocation4 + $0x2c] sm:$0xf]
        %v473 = vld [vmem:[#allocation4 + $0x30] sm:$0xf]
        %v474 = vld [vmem:[#allocation4 + $0x34] sm:$0xf]
        %v475 = vld [vmem:[#allocation4 + $0x38] sm:$0xf]
        %v476 = vld [vmem:[#allocation4 + $0x3c] sm:$0xf]
        %v477 = vld [vmem:[#allocation8 + $0x1] sm:$0x1]
        %v478 = vperm.slane %v477, 0
        %v495 = vunpack.c.l.b16 %v461
        %v496 = vunpack.c.l.b16 %v462
        %v497 = vunpack.c.l.b16 %v463
        %v498 = vunpack.c.l.b16 %v464
        %v499 = vunpack.c.l.b16 %v465
        %v500 = vunpack.c.l.b16 %v466
        %v501 = vunpack.c.l.b16 %v467
        %v502 = vunpack.c.l.b16 %v468
        %v503 = vunpack.c.l.b16 %v469
        %v504 = vunpack.c.l.b16 %v470
        %v505 = vunpack.c.l.b16 %v471
        %v506 = vunpack.c.l.b16 %v472
        %v507 = vunpack.c.l.b16 %v473
        %v508 = vunpack.c.l.b16 %v474
        %v509 = vunpack.c.l.b16 %v475
        %v510 = vunpack.c.l.b16 %v476
        %v511 = vpack.c.b16 %v496, %v495
        %v512 = vpack.c.b16 %v498, %v497
        %v513 = vpack.c.b16 %v500, %v499
        %v514 = vpack.c.b16 %v502, %v501
        %v515 = vpack.c.b16 %v504, %v503
        %v516 = vpack.c.b16 %v506, %v505
        %v517 = vpack.c.b16 %v508, %v507
        %v518 = vpack.c.b16 %v510, %v509
        %527 = vmatpush.bf16.msra.mxu0 %v518
        %528 = vmatpush.bf16.msra.mxu0 %v517
        %529 = vmatpush.bf16.msra.mxu0 %v516
        %530 = vmatpush.bf16.msra.mxu0 %v515
        %531 = vmatpush.bf16.msra.mxu0 %v514
        %532 = vmatpush.bf16.msra.mxu0 %v513
        %533 = vmatpush.bf16.msra.mxu0 %v512
        %534 = vmatpush.bf16.msra.mxu0 %v511
        %535 = vmatmul.bf16.gmra.mxu0 %v459
        %v536 = vpop.f32.mrf.mxu0
        %v537 = vadd.f32 %v478, %v536
        %v538 = vpop.f32.mrf.mxu0
        %v539 = vadd.f32 %v478, %v538
        %540 = vmatmul.bf16.gmra.mxu0 %v460
        %v541 = vpop.f32.mrf.mxu0
        %v542 = vadd.f32 %v478, %v541
        %v543 = vpop.f32.mrf.mxu0
        %v544 = vadd.f32 %v478, %v543
        %545 = vdwg.mxu0
        %v546 = vsub.f32 %v537, %v539
        %v547 = vstv %s321
        %v548 = vmul.f32 %v547, %v546
        %v549 = vadd.f32 %v539, %v548
        %v550 = vsub.f32 %v542, %v544
        %v551 = vmul.f32 %v547, %v550
        %v552 = vadd.f32 %v544, %v551
        %v553 = vpack.c.bf16 %v552, %v549
        %s554 = scalar_lea.vmem [#allocation4], 64
        %v555 = vld [vmem:[%s554] sm:$0xf]
        %v556 = vld [vmem:[%s554 + $0x4] sm:$0xf]
        %v557 = vld [vmem:[%s554 + $0x8] sm:$0xf]
        %v558 = vld [vmem:[%s554 + $0xc] sm:$0xf]
        %v559 = vld [vmem:[%s554 + $0x10] sm:$0xf]
        %v560 = vld [vmem:[%s554 + $0x14] sm:$0xf]
        %v561 = vld [vmem:[%s554 + $0x18] sm:$0xf]
        %v562 = vld [vmem:[%s554 + $0x1c] sm:$0xf]
        %v563 = vld [vmem:[%s554 + $0x20] sm:$0xf]
        %v564 = vld [vmem:[%s554 + $0x24] sm:$0xf]
        %v565 = vld [vmem:[%s554 + $0x28] sm:$0xf]
        %v566 = vld [vmem:[%s554 + $0x2c] sm:$0xf]
        %v567 = vld [vmem:[%s554 + $0x30] sm:$0xf]
        %v568 = vld [vmem:[%s554 + $0x34] sm:$0xf]
        %v569 = vld [vmem:[%s554 + $0x38] sm:$0xf]
        %v570 = vld [vmem:[%s554 + $0x3c] sm:$0xf]
        %v571 = vld [vmem:[#allocation8 + $0x2] sm:$0x1]
        %v572 = vperm.slane %v571, 0
        %v589 = vunpack.c.l.b16 %v555
        %v590 = vunpack.c.l.b16 %v556
        %v591 = vunpack.c.l.b16 %v557
        %v592 = vunpack.c.l.b16 %v558
        %v593 = vunpack.c.l.b16 %v559
        %v594 = vunpack.c.l.b16 %v560
        %v595 = vunpack.c.l.b16 %v561
        %v596 = vunpack.c.l.b16 %v562
        %v597 = vunpack.c.l.b16 %v563
        %v598 = vunpack.c.l.b16 %v564
        %v599 = vunpack.c.l.b16 %v565
        %v600 = vunpack.c.l.b16 %v566
        %v601 = vunpack.c.l.b16 %v567
        %v602 = vunpack.c.l.b16 %v568
        %v603 = vunpack.c.l.b16 %v569
        %v604 = vunpack.c.l.b16 %v570
        %v605 = vpack.c.b16 %v590, %v589
        %v606 = vpack.c.b16 %v592, %v591
        %v607 = vpack.c.b16 %v594, %v593
        %v608 = vpack.c.b16 %v596, %v595
        %v609 = vpack.c.b16 %v598, %v597
        %v610 = vpack.c.b16 %v600, %v599
        %v611 = vpack.c.b16 %v602, %v601
        %v612 = vpack.c.b16 %v604, %v603
        %621 = vmatpush.bf16.msra.mxu0 %v612
        %622 = vmatpush.bf16.msra.mxu0 %v611
        %623 = vmatpush.bf16.msra.mxu0 %v610
        %624 = vmatpush.bf16.msra.mxu0 %v609
        %625 = vmatpush.bf16.msra.mxu0 %v608
        %626 = vmatpush.bf16.msra.mxu0 %v607
        %627 = vmatpush.bf16.msra.mxu0 %v606
        %628 = vmatpush.bf16.msra.mxu0 %v605
        %629 = vmatmul.bf16.gmra.mxu0 %v553
        %v630 = vpop.f32.mrf.mxu0
        %v631 = vadd.f32 %v572, %v630
        %v632 = vpop.f32.mrf.mxu0
        %v633 = vadd.f32 %v572, %v632
        %634 = vdwg.mxu0
        %v635 = vmax.f32 %v631, 0.0
        %v636 = vmax.f32 %v633, 0.0
        %v637 = vpack.c.bf16 %v635, %v635
        %v638 = vpack.c.bf16 %v636, %v636
        %v639 = vld [vmem:[#allocation6] sm:$0xf]
        %v640 = vld [vmem:[#allocation6 + $0x4] sm:$0xf]
        %v641 = vld [vmem:[#allocation6 + $0x8] sm:$0xf]
        %v642 = vld [vmem:[#allocation6 + $0xc] sm:$0xf]
        %v643 = vld [vmem:[#allocation6 + $0x10] sm:$0xf]
        %v644 = vld [vmem:[#allocation6 + $0x14] sm:$0xf]
        %v645 = vld [vmem:[#allocation6 + $0x18] sm:$0xf]
        %v646 = vld [vmem:[#allocation6 + $0x1c] sm:$0xf]
        %v647 = vld [vmem:[#allocation6 + $0x20] sm:$0xf]
        %v648 = vld [vmem:[#allocation6 + $0x24] sm:$0xf]
        %v649 = vld [vmem:[#allocation6 + $0x28] sm:$0xf]
        %v650 = vld [vmem:[#allocation6 + $0x2c] sm:$0xf]
        %v651 = vld [vmem:[#allocation6 + $0x30] sm:$0xf]
        %v652 = vld [vmem:[#allocation6 + $0x34] sm:$0xf]
        %v653 = vld [vmem:[#allocation6 + $0x38] sm:$0xf]
        %v654 = vld [vmem:[#allocation6 + $0x3c] sm:$0xf]
        %v655 = vld [vmem:[#allocation6 + $0x40] sm:$0xf]
        %v656 = vld [vmem:[#allocation6 + $0x44] sm:$0xf]
        %v657 = vld [vmem:[#allocation6 + $0x48] sm:$0xf]
        %v658 = vld [vmem:[#allocation6 + $0x4c] sm:$0xf]
        %v659 = vld [vmem:[#allocation6 + $0x50] sm:$0xf]
        %v660 = vld [vmem:[#allocation6 + $0x54] sm:$0xf]
        %v661 = vld [vmem:[#allocation6 + $0x58] sm:$0xf]
        %v662 = vld [vmem:[#allocation6 + $0x5c] sm:$0xf]
        %v663 = vld [vmem:[#allocation6 + $0x60] sm:$0xf]
        %v664 = vld [vmem:[#allocation6 + $0x64] sm:$0xf]
        %v665 = vld [vmem:[#allocation6 + $0x68] sm:$0xf]
        %v666 = vld [vmem:[#allocation6 + $0x6c] sm:$0xf]
        %v667 = vld [vmem:[#allocation6 + $0x70] sm:$0xf]
        %v668 = vld [vmem:[#allocation6 + $0x74] sm:$0xf]
        %v669 = vld [vmem:[#allocation6 + $0x78] sm:$0xf]
        %v670 = vld [vmem:[#allocation6 + $0x7c] sm:$0xf]
        %v671 = vld [vmem:[#allocation8 + $0x3] sm:$0x1]
        %v672 = vperm.slane %v671, 0
        %v705 = vunpack.c.l.b16 %v639
        %v706 = vunpack.c.l.b16 %v640
        %v707 = vunpack.c.l.b16 %v641
        %v708 = vunpack.c.l.b16 %v642
        %v709 = vunpack.c.l.b16 %v643
        %v710 = vunpack.c.l.b16 %v644
        %v711 = vunpack.c.l.b16 %v645
        %v712 = vunpack.c.l.b16 %v646
        %v713 = vunpack.c.l.b16 %v647
        %v714 = vunpack.c.l.b16 %v648
        %v715 = vunpack.c.l.b16 %v649
        %v716 = vunpack.c.l.b16 %v650
        %v717 = vunpack.c.l.b16 %v651
        %v718 = vunpack.c.l.b16 %v652
        %v719 = vunpack.c.l.b16 %v653
        %v720 = vunpack.c.l.b16 %v654
        %v721 = vunpack.c.l.b16 %v655
        %v722 = vunpack.c.l.b16 %v656
        %v723 = vunpack.c.l.b16 %v657
        %v724 = vunpack.c.l.b16 %v658
        %v725 = vunpack.c.l.b16 %v659
        %v726 = vunpack.c.l.b16 %v660
        %v727 = vunpack.c.l.b16 %v661
        %v728 = vunpack.c.l.b16 %v662
        %v729 = vunpack.c.l.b16 %v663
        %v730 = vunpack.c.l.b16 %v664
        %v731 = vunpack.c.l.b16 %v665
        %v732 = vunpack.c.l.b16 %v666
        %v733 = vunpack.c.l.b16 %v667
        %v734 = vunpack.c.l.b16 %v668
        %v735 = vunpack.c.l.b16 %v669
        %v736 = vunpack.c.l.b16 %v670
        %v737 = vpack.c.b16 %v706, %v705
        %v738 = vpack.c.b16 %v708, %v707
        %v739 = vpack.c.b16 %v710, %v709
        %v740 = vpack.c.b16 %v712, %v711
        %v741 = vpack.c.b16 %v714, %v713
        %v742 = vpack.c.b16 %v716, %v715
        %v743 = vpack.c.b16 %v718, %v717
        %v744 = vpack.c.b16 %v720, %v719
        %v745 = vpack.c.b16 %v722, %v721
        %v746 = vpack.c.b16 %v724, %v723
        %v747 = vpack.c.b16 %v726, %v725
        %v748 = vpack.c.b16 %v728, %v727
        %v749 = vpack.c.b16 %v730, %v729
        %v750 = vpack.c.b16 %v732, %v731
        %v751 = vpack.c.b16 %v734, %v733
        %v752 = vpack.c.b16 %v736, %v735
        %769 = vmatpush.bf16.msra.mxu0 %v744
        %770 = vmatpush.bf16.msra.mxu0 %v743
        %771 = vmatpush.bf16.msra.mxu0 %v742
        %772 = vmatpush.bf16.msra.mxu0 %v741
        %773 = vmatpush.bf16.msra.mxu0 %v740
        %774 = vmatpush.bf16.msra.mxu0 %v739
        %775 = vmatpush.bf16.msra.mxu0 %v738
        %776 = vmatpush.bf16.msra.mxu0 %v737
        %777 = vmatmul.bf16.gmra.mxu0 %v637
        %v778 = vpop.f32.mrf.mxu0
        %v779 = vadd.f32 %v672, %v778
        %v780 = vpop.f32.mrf.mxu0
        %781 = vdwg.mxu0
        %782 = vmatpush.bf16.msra.mxu0 %v752
        %783 = vmatpush.bf16.msra.mxu0 %v751
        %784 = vmatpush.bf16.msra.mxu0 %v750
        %785 = vmatpush.bf16.msra.mxu0 %v749
        %786 = vmatpush.bf16.msra.mxu0 %v748
        %787 = vmatpush.bf16.msra.mxu0 %v747
        %788 = vmatpush.bf16.msra.mxu0 %v746
        %789 = vmatpush.bf16.msra.mxu0 %v745
        %790 = vmatmul.bf16.gmra.mxu0 %v638
        %v791 = vpop.f32.mrf.mxu0
        %v792 = vadd.f32 %v779, %v791
        %v793 = vpop.f32.mrf.mxu0
        %794 = vdwg.mxu0
        %795 = vst [vmem:[%s320] sm:$0xff] %v792
        %p796 = scmp.lt.s32.totalorder %s28, 3
        %s797 = scalar_select %p796, %s28, 3
        %s798 = smul.addr %s797, 8
        %s799 = scalar_lea.vmem %s7, %s798
        // Predicated region
        $region57: #{vae_interp_batch.1} parent=43 // pred_check
          %p800 = pneg %p182
        $region58: #{vae_interp_batch.1} parent=43 // pred_check_branch
          %802 = sbr.rel (%p800) target = $region60
        $region59: #{vae_interp_batch.1} parent=43 // pred_region
          _
        $region60: #{vae_interp_batch.1} parent=43 // pred_fallthru
          _
      $region44: #{vae_interp_batch.1} parent=5 // pred_fallthru
        _
      %p803 = scmp.le.s32.totalorder 2, %s23
      // Predicated region
      $region61: #{vae_interp_batch.1} parent=5 // pred_check
        %p804 = pneg %p803
      $region62: #{vae_interp_batch.1} parent=5 // pred_check_branch
        %806 = sbr.rel (%p804) target = $region64
      $region63: #{vae_interp_batch.1} parent=5 // pred_region
        %s807 = ssub.s32 %s23, 2
        // Predicated region
        $region65: #{vae_interp_batch.1} parent=63 // pred_check
          %p808 = pneg %p188
        $region66: #{vae_interp_batch.1} parent=63 // pred_check_branch
          %810 = sbr.rel (%p808) target = $region68
        $region67: #{vae_interp_batch.1} parent=63 // pred_region
          %p811 = scmp.lt.s32.totalorder %s29, 3
          %s812 = scalar_select %p811, %s29, 3
          %s813 = smul.addr %s812, 8
          %s814 = scalar_lea.vmem %s7, %s813
        $region68: #{vae_interp_batch.1} parent=63 // pred_fallthru
          _
      $region64: #{vae_interp_batch.1} parent=5 // pred_fallthru
        _
    $region6: #{vae_interp_batch.1} parent=1 // loop_footer
      %s27 = sadd.s32 1, %s23
    $region7: #{vae_interp_batch.1} parent=1 // loop_footer_branch
      %22 = sbr.rel target = $region3
    $region8: #{vae_interp_batch.1} parent=1 // loop_exit
      _
    %815 = vsyncpa [#allocation5], 1
    %s816 = scalar_lea.sflag [#allocation5], 1
    %817 = vsyncpa %s816, 1
    %818 = vsyncpa [#allocation7], 1

</llo_original>
